<compile_context>
chip_gen: v5e
topology: v5e:2x2
jax: 0.10.0
libtpu: 0.0.40
codegen_flags: <defaults>
</compile_context>

<pallas_src>
import jax
import jax.numpy as jnp
import numpy as np
from jax.experimental import pallas as pl

LEAKY_SLOPE = 0.01  # nn.LeakyReLU default negative slope


def _leaky(x):
    # max(x, a*x) == LeakyReLU(x) for 0 < a < 1 (2 VALU ops instead of 3).
    return jnp.maximum(x, LEAKY_SLOPE * x)


# ----------------------------------------------------------------------------
# Single fused Pallas kernel: foil MLP + wing conv encoder + broadcast multiply
# ----------------------------------------------------------------------------
def _make_fused_kernel(meta, B, nt, mlp_final_act, conv_act):
    mlp_slots = meta['mlp_slots']
    conv_slots = meta['conv_slots']
    K = meta['K']
    P = K // 2
    BN = B * nt
    one = np.float32(1.0)
    zero = np.float32(0.0)

    def kernel(foil_ref, wing_ref, wbuf_ref, out_ref):
        def take(slot):
            # Static, 8-row-aligned, lane-0-based view into the packed buffer.
            r0, rows, cols = slot
            return wbuf_ref[r0:r0 + rows, 0:cols]

        # ------------------ foil MLP, column layout (features, B) -----------
        # TODO(synk): flowvae `mlp` source not provided; hidden layers use
        # LeakyReLU, final layer assumed linear; dropout=0.0 -> identity.
        h = foil_ref[...]                                       # (21, B) f32
        n_mlp = len(mlp_slots)
        for i, (ws, bs) in enumerate(mlp_slots):
            h = jnp.dot(take(ws), h,
                        preferred_element_type=jnp.float32) + take(bs)
            if i < n_mlp - 1 or mlp_final_act:
                h = _leaky(h)                                   # (h_last, B)

        # -------------- lane-index machinery (built once per call) ----------
        lane = jax.lax.broadcasted_iota(jnp.int32, (B, BN), 1)
        row = jax.lax.broadcasted_iota(jnp.int32, (B, BN), 0)
        # slab[b, b*nt : (b+1)*nt] = 1 : block-diagonal foil->lane selector.
        slab = jnp.where((lane >= row * nt) & (lane < (row + 1) * nt),
                         one, zero)                             # (B, BN)

        shift_ops = {}
        if K > 1:
            # Banded 0/1 shift operators: (x @ T_d)[:, t] = x[:, t+d] when
            # t+d stays inside the same batch slab, else 0 (== zero padding).
            src = jax.lax.broadcasted_iota(jnp.int32, (BN, BN), 0)
            dst = jax.lax.broadcasted_iota(jnp.int32, (BN, BN), 1)

            def batch_of(idx):
                b = jnp.zeros(idx.shape, jnp.int32)
                for bb in range(1, B):
                    b = b + jnp.where(idx >= bb * nt, 1, 0)
                return b

            same_slab = batch_of(src) == batch_of(dst)
            for k in range(K):
                d = k - P
                if d == 0:
                    continue
                shift_ops[d] = jnp.where((src == dst + d) & same_slab,
                                         one, zero)             # (BN, BN)

        # ------------- wing conv encoder on lane-fused (Cin, B*nt) ----------
        # TODO(synk): flowvae `convEncoder` internals not provided; assumed
        # Conv1d + LeakyReLU per layer (pool_kernels=0 -> no pooling, no BN).
        x = wing_ref[...]                                       # (6, B*nt)
        for tap_slots, bs in conv_slots:
            z = None
            for k, ws in enumerate(tap_slots):
                d = k - P
                xk = x if d == 0 else jnp.dot(
                    x, shift_ops[d], preferred_element_type=jnp.float32)
                zk = jnp.dot(take(ws), xk,
                             preferred_element_type=jnp.float32)
                z = zk if z is None else z + zk
            z = z + take(bs)
            if conv_act:
                z = _leaky(z)
            x = z                                               # (Cout, B*nt)

        # --------- fused broadcast-multiply epilogue, lane-dense write ------
        h_b = jnp.dot(h, slab, preferred_element_type=jnp.float32)  # (h, BN)
        out_ref[...] = x * h_b

    return kernel


# ----------------------------------------------------------------------------
# Parameter setup / packing / wrapper
# ----------------------------------------------------------------------------
def init_params(key, h_e1, h_e2, kernel_size=1):
    if h_e1[-1] != h_e2[-1]:
        raise AttributeError('h_e1[-1] (%d) != h_e2[-1] (%d)'
                             % (h_e1[-1], h_e2[-1]))
    mlp_dims = [21] + list(h_e1)
    conv_dims = [6] + list(h_e2)
    params = {'mlp': [], 'conv': []}
    for fin, fout in zip(mlp_dims[:-1], mlp_dims[1:]):
        key, kw, kb = jax.random.split(key, 3)
        w = jax.random.normal(kw, (fout, fin), jnp.float32) / np.sqrt(fin)
        b = 0.01 * jax.random.normal(kb, (fout, 1), jnp.float32)
        params['mlp'].append((w, b))
    for cin, cout in zip(conv_dims[:-1], conv_dims[1:]):
        key, kw, kb = jax.random.split(key, 3)
        w = (jax.random.normal(kw, (cout, cin, kernel_size), jnp.float32)
             / np.sqrt(cin * kernel_size))
        b = 0.01 * jax.random.normal(kb, (cout, 1), jnp.float32)
        params['conv'].append((w, b))
    return params


def prepare_params(params):
    """Pack every weight/bias into ONE f32 buffer (8-aligned row blocks)."""
    K = int(params['conv'][0][0].shape[2])
    if K != 1 and K % 2 == 0:
        # torch Conv1d with padding=K//2 and even K changes the output length.
        raise ValueError('only odd kernel sizes (or 1) are supported')

    entries = []

    def add(a):
        entries.append(np.asarray(a, np.float32))
        return len(entries) - 1

    mlp_ids, conv_ids = [], []
    for (w, b) in params['mlp']:
        mlp_ids.append((add(w), add(np.asarray(b).reshape(-1, 1))))
    for (w, b) in params['conv']:
        w = np.asarray(w)                                   # (Cout, Cin, K)
        taps = tuple(add(w[:, :, kk]) for kk in range(w.shape[2]))
        conv_ids.append((taps, add(np.asarray(b).reshape(-1, 1))))

    slots, r = [], 0
    for a in entries:
        slots.append((r, a.shape[0], a.shape[1]))
        r += ((a.shape[0] + 7) // 8) * 8                    # 8-aligned blocks
    cmax = max(a.shape[1] for a in entries)
    buf = np.zeros((max(r, 8), cmax), np.float32)
    for a, (r0, rows, cols) in zip(entries, slots):
        buf[r0:r0 + rows, :cols] = a

    meta = dict(
        K=K,
        h_last=int(params['mlp'][-1][0].shape[0]),
        mlp_slots=tuple((slots[wi], slots[bi]) for wi, bi in mlp_ids),
        conv_slots=tuple((tuple(slots[t] for t in taps), slots[bi])
                         for taps, bi in conv_ids),
    )
    return jnp.asarray(buf), meta


def make_forward(meta, *, mlp_final_act=False, conv_act=True):
    h_last = meta['h_last']

    def forward(packed_params, inputs):
        # inputs: (B, 27, nt) in PyTorch NCL convention
        B, C, nt = inputs.shape
        assert C == 27, C
        # Wrapper-side layout plumbing only (cheap): lane-fuse the batch.
        foil_x = jnp.transpose(inputs[:, 6:, 0])                    # (21, B)
        wing_x = jnp.transpose(inputs[:, :6, :], (1, 0, 2)).reshape(6, B * nt)
        kernel = _make_fused_kernel(meta, B, nt, mlp_final_act, conv_act)
        # No grid, no BlockSpecs: 3 whole-array VMEM operands, one launch.
        out2d = pl.pallas_call(
            kernel,
            out_shape=jax.ShapeDtypeStruct((h_last, B * nt), jnp.float32),
        )(foil_x, wing_x, packed_params)
        # (h_last, B*nt) lane-dense slab -> torch layout (B, h_last, nt).
        return jnp.transpose(out2d.reshape(h_last, B, nt), (1, 0, 2))

    return forward


# ----------------------------------------------------------------------------
# Pure-JAX reference (same assumed architecture), high-precision matmuls
# ----------------------------------------------------------------------------
def reference_forward(params, inputs, *, mlp_final_act=False, conv_act=True):
    prec = jax.lax.Precision.HIGHEST
    h = inputs[:, 6:, 0]                                    # (B, 21)
    n = len(params['mlp'])
    for i, (w, b) in enumerate(params['mlp']):
        h = jnp.matmul(h, w.T, precision=prec) + b[:, 0]
        if i < n - 1 or mlp_final_act:
            h = _leaky(h)
    x = inputs[:, :6, :]                                    # (B, 6, nt)
    for (w, b) in params['conv']:
        P = w.shape[2] // 2
        x = jax.lax.conv_general_dilated(
            x, w, window_strides=(1,), padding=[(P, P)],
            dimension_numbers=('NCH', 'OIH', 'NCH'), precision=prec)
        x = x + b[None, :, :]
        if conv_act:
            x = _leaky(x)
    return x * h[:, :, None]                                # (B, h, nt)


if __name__ == "__main__":
    def run_case(key, h_e1, h_e2, kernel_size, nt, B):
        kp, kx = jax.random.split(key)
        params = init_params(kp, h_e1, h_e2, kernel_size)
        packed, meta = prepare_params(params)
        inputs = jax.random.normal(kx, (B, 27, nt), jnp.float32)

        fwd = jax.jit(make_forward(meta))
        out = jax.block_until_ready(fwd(packed, inputs))

        assert out.shape == (B, h_e1[-1], nt), out.shape
        assert bool(jnp.all(jnp.isfinite(out)))

        ref = reference_forward(params, inputs)
        scale = float(jnp.max(jnp.abs(ref))) + 1e-6
        err = float(jnp.max(jnp.abs(out - ref)))
        # tight f32 tolerance (previously 5e-2)
        assert err <= 1e-4 * scale, (err, scale)

    key = jax.random.PRNGKey(0)
    k1, k2 = jax.random.split(key)
    # module defaults: kernel=1 (pointwise Conv1d), nt=61
    run_case(k1, h_e1=[32, 32], h_e2=[16, 32], kernel_size=1, nt=61, B=2)
    # odd kernel > 1 path (banded-shift taps) + batch > vreg-lane boundary
    run_case(k2, h_e1=[24, 32], h_e2=[16, 32], kernel_size=3, nt=61, B=3)
    print("KERNEL_OK")
</pallas_src>

<mosaic_0001>
module attributes {stable_mosaic.version = 11 : i64} {
  func.func @kernel(%arg0: memref<21x2xf32, #tpu.memory_space<vmem>>, %arg1: memref<6x122xf32, #tpu.memory_space<vmem>>, %arg2: memref<224x32xf32, #tpu.memory_space<vmem>>, %arg3: memref<32x122xf32, #tpu.memory_space<vmem>>) attributes {dimension_semantics = [], scalar_prefetch = 0 : i64, scratch_operands = 0 : i64, tpu.core_type = #tpu.core_type<tc>} {
    %c0 = arith.constant 0 : index
    %c0_0 = arith.constant 0 : index
    %0 = vector.load %arg0[%c0, %c0_0] : memref<21x2xf32, #tpu.memory_space<vmem>>, vector<21x2xf32>
    %c0_1 = arith.constant 0 : index
    %c0_2 = arith.constant 0 : index
    %1 = vector.load %arg2[%c0_1, %c0_2] : memref<224x32xf32, #tpu.memory_space<vmem>>, vector<32x21xf32>
    %cst = arith.constant dense<0.000000e+00> : vector<32x2xf32>
    %2 = tpu.matmul %1, %0, %cst {dimension_numbers = #tpu.dot_dimension_numbers<[1], [0], [0], [1], [0, 0, 1, 1], [], []>} : vector<32x21xf32>, vector<21x2xf32>, vector<32x2xf32> -> vector<32x2xf32>
    %c32 = arith.constant 32 : index
    %c0_3 = arith.constant 0 : index
    %3 = vector.load %arg2[%c32, %c0_3] : memref<224x32xf32, #tpu.memory_space<vmem>>, vector<32x1xf32>
    %4 = vector.broadcast %3 : vector<32x1xf32> to vector<32x2xf32>
    %5 = arith.addf %2, %4 : vector<32x2xf32>
    %cst_4 = arith.constant 0.00999999977 : f32
    %6 = vector.broadcast %cst_4 : f32 to vector<32x2xf32>
    %7 = arith.mulf %6, %5 : vector<32x2xf32>
    %8 = arith.maximumf %5, %7 : vector<32x2xf32>
    %c64 = arith.constant 64 : index
    %c0_5 = arith.constant 0 : index
    %9 = vector.load %arg2[%c64, %c0_5] : memref<224x32xf32, #tpu.memory_space<vmem>>, vector<32x32xf32>
    %cst_6 = arith.constant dense<0.000000e+00> : vector<32x2xf32>
    %10 = tpu.matmul %9, %8, %cst_6 {dimension_numbers = #tpu.dot_dimension_numbers<[1], [0], [0], [1], [0, 0, 1, 1], [], []>} : vector<32x32xf32>, vector<32x2xf32>, vector<32x2xf32> -> vector<32x2xf32>
    %c96 = arith.constant 96 : index
    %c0_7 = arith.constant 0 : index
    %11 = vector.load %arg2[%c96, %c0_7] : memref<224x32xf32, #tpu.memory_space<vmem>>, vector<32x1xf32>
    %12 = vector.broadcast %11 : vector<32x1xf32> to vector<32x2xf32>
    %13 = arith.addf %10, %12 : vector<32x2xf32>
    %14 = tpu.iota {dimensions = array<i32: 1>} : vector<2x122xi32>
    %15 = tpu.iota {dimensions = array<i32: 0>} : vector<2x122xi32>
    %c61_i32 = arith.constant 61 : i32
    %16 = vector.broadcast %c61_i32 : i32 to vector<2x122xi32>
    %17 = arith.muli %15, %16 : vector<2x122xi32>
    %18 = arith.cmpi sge, %14, %17 : vector<2x122xi32>
    %c1_i32 = arith.constant 1 : i32
    %19 = vector.broadcast %c1_i32 : i32 to vector<2x122xi32>
    %20 = arith.addi %15, %19 : vector<2x122xi32>
    %c61_i32_8 = arith.constant 61 : i32
    %21 = vector.broadcast %c61_i32_8 : i32 to vector<2x122xi32>
    %22 = arith.muli %20, %21 : vector<2x122xi32>
    %23 = arith.cmpi slt, %14, %22 : vector<2x122xi32>
    %24 = arith.andi %18, %23 : vector<2x122xi1>
    %cst_9 = arith.constant 1.000000e+00 : f32
    %cst_10 = arith.constant 0.000000e+00 : f32
    %25 = vector.broadcast %cst_9 : f32 to vector<2x122xf32>
    %26 = vector.broadcast %cst_10 : f32 to vector<2x122xf32>
    %27 = arith.select %24, %25, %26 : vector<2x122xi1>, vector<2x122xf32>
    %c0_11 = arith.constant 0 : index
    %c0_12 = arith.constant 0 : index
    %28 = vector.load %arg1[%c0_11, %c0_12] : memref<6x122xf32, #tpu.memory_space<vmem>>, vector<6x122xf32>
    %c128 = arith.constant 128 : index
    %c0_13 = arith.constant 0 : index
    %29 = vector.load %arg2[%c128, %c0_13] : memref<224x32xf32, #tpu.memory_space<vmem>>, vector<16x6xf32>
    %cst_14 = arith.constant dense<0.000000e+00> : vector<16x122xf32>
    %30 = tpu.matmul %29, %28, %cst_14 {dimension_numbers = #tpu.dot_dimension_numbers<[1], [0], [0], [1], [0, 0, 1, 1], [], []>} : vector<16x6xf32>, vector<6x122xf32>, vector<16x122xf32> -> vector<16x122xf32>
    %c144 = arith.constant 144 : index
    %c0_15 = arith.constant 0 : index
    %31 = vector.load %arg2[%c144, %c0_15] : memref<224x32xf32, #tpu.memory_space<vmem>>, vector<16x1xf32>
    %32 = vector.broadcast %31 : vector<16x1xf32> to vector<16x122xf32>
    %33 = arith.addf %30, %32 : vector<16x122xf32>
    %cst_16 = arith.constant 0.00999999977 : f32
    %34 = vector.broadcast %cst_16 : f32 to vector<16x122xf32>
    %35 = arith.mulf %34, %33 : vector<16x122xf32>
    %36 = arith.maximumf %33, %35 : vector<16x122xf32>
    %c160 = arith.constant 160 : index
    %c0_17 = arith.constant 0 : index
    %37 = vector.load %arg2[%c160, %c0_17] : memref<224x32xf32, #tpu.memory_space<vmem>>, vector<32x16xf32>
    %cst_18 = arith.constant dense<0.000000e+00> : vector<32x122xf32>
    %38 = tpu.matmul %37, %36, %cst_18 {dimension_numbers = #tpu.dot_dimension_numbers<[1], [0], [0], [1], [0, 0, 1, 1], [], []>} : vector<32x16xf32>, vector<16x122xf32>, vector<32x122xf32> -> vector<32x122xf32>
    %c192 = arith.constant 192 : index
    %c0_19 = arith.constant 0 : index
    %39 = vector.load %arg2[%c192, %c0_19] : memref<224x32xf32, #tpu.memory_space<vmem>>, vector<32x1xf32>
    %40 = vector.broadcast %39 : vector<32x1xf32> to vector<32x122xf32>
    %41 = arith.addf %38, %40 : vector<32x122xf32>
    %cst_20 = arith.constant 0.00999999977 : f32
    %42 = vector.broadcast %cst_20 : f32 to vector<32x122xf32>
    %43 = arith.mulf %42, %41 : vector<32x122xf32>
    %44 = arith.maximumf %41, %43 : vector<32x122xf32>
    %cst_21 = arith.constant dense<0.000000e+00> : vector<32x122xf32>
    %45 = tpu.matmul %13, %27, %cst_21 {dimension_numbers = #tpu.dot_dimension_numbers<[1], [0], [0], [1], [0, 0, 1, 1], [], []>} : vector<32x2xf32>, vector<2x122xf32>, vector<32x122xf32> -> vector<32x122xf32>
    %46 = arith.mulf %44, %45 : vector<32x122xf32>
    %c0_22 = arith.constant 0 : index
    %c0_23 = arith.constant 0 : index
    %47 = vector.load %arg3[%c0_22, %c0_23] : memref<32x122xf32, #tpu.memory_space<vmem>>, vector<32x122xf32>
    tpu.vector_store %arg3[%c0_22, %c0_23], %46 {strides = array<i32>} : memref<32x122xf32, #tpu.memory_space<vmem>>, vector<32x122xf32>,
    return
  }
}

</mosaic_0001>

<llo_original>
// kernel: forward.1
$region0: #{forward.1}
  #allocation0 [shape = 'u32[]', space=smem, size = 0x4, offset = 0x4, fixed_abs, tag = 'smem constant byte address 0x4 - core index']
  #allocation1 [shape = 'u32[72,128]{1,0:T(1,128)}', space=vmem, size = 0x9000, scoped, tag = 'internal scratch']
  %s0 = inlined_call_operand.vmem [shape: f32[21,2], index: 0, kind: input, shape index: {}]
  %s1 = inlined_call_operand.vmem [shape: f32[6,122], index: 1, kind: input, shape index: {}]
  %s2 = inlined_call_operand.vmem [shape: f32[224,32], index: 2, kind: input, shape index: {}]
  %s3 = inlined_call_operand.vmem [shape: f32[32,122], index: 3, kind: output, shape index: {}]
  %s4 = sld [smem:[#allocation0]]
  $region22: #{forward.1} parent=0
    _
  %s6 = ssub.s32 1, %s4
  %s7 = scalar_select 0, %s6, %s4
  // Predicated region
  $region2: #{forward.1} parent=0 // pred_check
    _
  $region3: #{forward.1} parent=0 // pred_check_branch
    %9 = sbr.rel (0) target = $region5
  $region4: #{forward.1} parent=0 // pred_region
    _
  $region5: #{forward.1} parent=0 // pred_fallthru
    _
  // Predicated region
  $region6: #{forward.1} parent=0 // pred_check
    _
  $region7: #{forward.1} parent=0 // pred_check_branch
    %11 = sbr.rel (0) target = $region9
  $region8: #{forward.1} parent=0 // pred_region
    _
  $region9: #{forward.1} parent=0 // pred_fallthru
    _
  // Predicated region
  $region10: #{forward.1} parent=0 // pred_check
    _
  $region11: #{forward.1} parent=0 // pred_check_branch
    %13 = sbr.rel (0) target = $region13
  $region12: #{forward.1} parent=0 // pred_region
    _
  $region13: #{forward.1} parent=0 // pred_fallthru
    _
  %v14 = vld [vmem:[%s0] sm:$0xff]
  %v15 = vld [vmem:[%s0 + $0x8] sm:$0xff]
  %v16 = vld [vmem:[%s0 + $0x10] sm:$0x1f]
  %v17 = vld [vmem:[%s2] sm:$0xff]
  %v18 = vld [vmem:[%s2 + $0x8] sm:$0xff]
  %v19 = vld [vmem:[%s2 + $0x10] sm:$0xff]
  %v20 = vld [vmem:[%s2 + $0x18] sm:$0xff]
  %v21 = vld [vmem:[%s2 + $0x20] sm:$0xff]
  %v22 = vld [vmem:[%s2 + $0x28] sm:$0xff]
  %v23 = vld [vmem:[%s2 + $0x30] sm:$0xff]
  %v24 = vld [vmem:[%s2 + $0x38] sm:$0xff]
  %26 = vset.pattern.permute.xlu0 0
  %27 = vperm.xlu0 %26, %v21
  %v28 = vpop.permute.xlu0 %27
  %31 = vset.pattern.permute.xlu0 0
  %32 = vperm.xlu0 %31, %v22
  %v33 = vpop.permute.xlu0 %32
  %36 = vset.pattern.permute.xlu0 0
  %37 = vperm.xlu0 %36, %v23
  %v38 = vpop.permute.xlu0 %37
  %41 = vset.pattern.permute.xlu0 0
  %42 = vperm.xlu0 %41, %v24
  %v43 = vpop.permute.xlu0 %42
  %vm45 = vcmask 171008
  %v47 = vsel %vm45, %v17, 0
  %v50 = vsel %vm45, %v18, 0
  %v53 = vsel %vm45, %v19, 0
  %v56 = vsel %vm45, %v20, 0
  %vm58 = vcmask 1044480
  %v60 = vsel %vm58, %v16, 0
  %62 = vmatpush.msra.mxu0 0.0
  %63 = vmatpush.msra.mxu0 0.0
  %64 = vmatpush.msra.mxu0 0.0
  %65 = vmatpush.msra.mxu0 0.0
  %66 = vmatpush.msra.mxu0 0.0
  %67 = vmatpush.msra.mxu0 0.0
  %68 = vmatpush.msra.mxu0 0.0
  %69 = vmatpush.msra.mxu0 0.0
  %70 = vmatpush.msra.mxu0 0.0
  %71 = vmatpush.msra.mxu0 0.0
  %72 = vmatpush.msra.mxu0 0.0
  %73 = vmatpush.msra.mxu0 0.0
  %74 = vmatpush.msra.mxu0 0.0
  %75 = vmatpush.msra.mxu0 %v60
  %76 = vmatpush.msra.mxu0 %v15
  %77 = vmatpush.msra.mxu0 %v14
  %78 = vmatmul.f32.gmra.mxu0 %v47
  %v79 = vpop.f32.mrf.mxu0
  %v80 = vadd.f32 %v28, %v79
  %81 = vmatmul.f32.gmra.mxu0 %v50
  %v82 = vpop.f32.mrf.mxu0
  %v83 = vadd.f32 %v33, %v82
  %84 = vmatmul.f32.gmra.mxu0 %v53
  %v85 = vpop.f32.mrf.mxu0
  %v86 = vadd.f32 %v38, %v85
  %87 = vmatmul.f32.gmra.mxu0 %v56
  %v88 = vpop.f32.mrf.mxu0
  %v89 = vadd.f32 %v43, %v88
  %90 = vdwg.mxu0
  %v91 = vmul.f32 %v80, 0.01
  %v92 = vmul.f32 %v83, 0.01
  %v93 = vmul.f32 %v86, 0.01
  %v94 = vmul.f32 %v89, 0.01
  %v95 = vmax.f32 %v80, %v91
  %v96 = vmax.f32 %v83, %v92
  %v97 = vmax.f32 %v86, %v93
  %v98 = vmax.f32 %v89, %v94
  %v99 = vld [vmem:[%s2 + $0x40] sm:$0xff]
  %v100 = vld [vmem:[%s2 + $0x48] sm:$0xff]
  %v101 = vld [vmem:[%s2 + $0x50] sm:$0xff]
  %v102 = vld [vmem:[%s2 + $0x58] sm:$0xff]
  %v103 = vld [vmem:[%s2 + $0x60] sm:$0xff]
  %v104 = vld [vmem:[%s2 + $0x68] sm:$0xff]
  %v105 = vld [vmem:[%s2 + $0x70] sm:$0xff]
  %v106 = vld [vmem:[%s2 + $0x78] sm:$0xff]
  %108 = vset.pattern.permute.xlu0 0
  %109 = vperm.xlu0 %108, %v103
  %v110 = vpop.permute.xlu0 %109
  %113 = vset.pattern.permute.xlu0 0
  %114 = vperm.xlu0 %113, %v104
  %v115 = vpop.permute.xlu0 %114
  %118 = vset.pattern.permute.xlu0 0
  %119 = vperm.xlu0 %118, %v105
  %v120 = vpop.permute.xlu0 %119
  %123 = vset.pattern.permute.xlu0 0
  %124 = vperm.xlu0 %123, %v106
  %v125 = vpop.permute.xlu0 %124
  %vm127 = vcmask 261120
  %v129 = vsel %vm127, %v99, 0
  %v132 = vsel %vm127, %v100, 0
  %v135 = vsel %vm127, %v101, 0
  %v138 = vsel %vm127, %v102, 0
  %140 = vmatpush.msra.mxu0 0.0
  %141 = vmatpush.msra.mxu0 0.0
  %142 = vmatpush.msra.mxu0 0.0
  %143 = vmatpush.msra.mxu0 0.0
  %144 = vmatpush.msra.mxu0 0.0
  %145 = vmatpush.msra.mxu0 0.0
  %146 = vmatpush.msra.mxu0 0.0
  %147 = vmatpush.msra.mxu0 0.0
  %148 = vmatpush.msra.mxu0 0.0
  %149 = vmatpush.msra.mxu0 0.0
  %150 = vmatpush.msra.mxu0 0.0
  %151 = vmatpush.msra.mxu0 0.0
  %152 = vmatpush.msra.mxu0 %v98
  %153 = vmatpush.msra.mxu0 %v97
  %154 = vmatpush.msra.mxu0 %v96
  %155 = vmatpush.msra.mxu0 %v95
  %156 = vmatmul.f32.gmra.mxu0 %v129
  %v157 = vpop.f32.mrf.mxu0
  %v158 = vadd.f32 %v110, %v157
  %159 = vmatmul.f32.gmra.mxu0 %v132
  %v160 = vpop.f32.mrf.mxu0
  %v161 = vadd.f32 %v115, %v160
  %162 = vmatmul.f32.gmra.mxu0 %v135
  %v163 = vpop.f32.mrf.mxu0
  %v164 = vadd.f32 %v120, %v163
  %165 = vmatmul.f32.gmra.mxu0 %v138
  %v166 = vpop.f32.mrf.mxu0
  %v167 = vadd.f32 %v125, %v166
  %168 = vdwg.mxu0
  %v169 = vlaneseq
  %v170 = vand.u32 %v169, 127
  %v171 = vlaneseq
  %v172 = vshrl.u32 %v171, 7
  %v173 = vmul.u32 %v172, 61
  %vm174 = vcmp.ge.s32.totalorder %v170, %v173
  %v175 = vadd.s32 %v172, 1
  %v176 = vmul.u32 %v175, 61
  %vm177 = vcmp.lt.s32.totalorder %v170, %v176
  %vm178 = vmand %vm174, %vm177
  %v179 = vsel %vm178, 1.0, 0.0
  %v180 = vld [vmem:[%s1] sm:$0x3f]
  %v181 = vld [vmem:[%s2 + $0x80] sm:$0xff]
  %v182 = vld [vmem:[%s2 + $0x88] sm:$0xff]
  %v183 = vld [vmem:[%s2 + $0x90] sm:$0xff]
  %v184 = vld [vmem:[%s2 + $0x98] sm:$0xff]
  %186 = vset.pattern.permute.xlu0 0
  %187 = vperm.xlu0 %186, %v183
  %v188 = vpop.permute.xlu0 %187
  %191 = vset.pattern.permute.xlu0 0
  %192 = vperm.xlu0 %191, %v184
  %v193 = vpop.permute.xlu0 %192
  %vm195 = vcmask 48128
  %v197 = vsel %vm195, %v181, 0
  %v200 = vsel %vm195, %v182, 0
  %vm202 = vcmask 1045504
  %v204 = vsel %vm202, %v180, 0
  %206 = vmatpush.msra.mxu0 0.0
  %207 = vmatpush.msra.mxu0 0.0
  %208 = vmatpush.msra.mxu0 0.0
  %209 = vmatpush.msra.mxu0 0.0
  %210 = vmatpush.msra.mxu0 0.0
  %211 = vmatpush.msra.mxu0 0.0
  %212 = vmatpush.msra.mxu0 0.0
  %213 = vmatpush.msra.mxu0 0.0
  %214 = vmatpush.msra.mxu0 0.0
  %215 = vmatpush.msra.mxu0 0.0
  %216 = vmatpush.msra.mxu0 0.0
  %217 = vmatpush.msra.mxu0 0.0
  %218 = vmatpush.msra.mxu0 0.0
  %219 = vmatpush.msra.mxu0 0.0
  %220 = vmatpush.msra.mxu0 0.0
  %221 = vmatpush.msra.mxu0 %v204
  %222 = vmatmul.f32.gmra.mxu0 %v197
  %v223 = vpop.f32.mrf.mxu0
  %v224 = vadd.f32 %v188, %v223
  %225 = vmatmul.f32.gmra.mxu0 %v200
  %v226 = vpop.f32.mrf.mxu0
  %v227 = vadd.f32 %v193, %v226
  %228 = vdwg.mxu0
  %v229 = vmul.f32 %v224, 0.01
  %v230 = vmul.f32 %v227, 0.01
  %v231 = vmax.f32 %v224, %v229
  %v232 = vmax.f32 %v227, %v230
  %v233 = vld [vmem:[%s2 + $0xa0] sm:$0xff]
  %v234 = vld [vmem:[%s2 + $0xa8] sm:$0xff]
  %v235 = vld [vmem:[%s2 + $0xb0] sm:$0xff]
  %v236 = vld [vmem:[%s2 + $0xb8] sm:$0xff]
  %v237 = vld [vmem:[%s2 + $0xc0] sm:$0xff]
  %v238 = vld [vmem:[%s2 + $0xc8] sm:$0xff]
  %v239 = vld [vmem:[%s2 + $0xd0] sm:$0xff]
  %v240 = vld [vmem:[%s2 + $0xd8] sm:$0xff]
  %242 = vset.pattern.permute.xlu0 0
  %243 = vperm.xlu0 %242, %v237
  %v244 = vpop.permute.xlu0 %243
  %247 = vset.pattern.permute.xlu0 0
  %248 = vperm.xlu0 %247, %v238
  %v249 = vpop.permute.xlu0 %248
  %252 = vset.pattern.permute.xlu0 0
  %253 = vperm.xlu0 %252, %v239
  %v254 = vpop.permute.xlu0 %253
  %257 = vset.pattern.permute.xlu0 0
  %258 = vperm.xlu0 %257, %v240
  %v259 = vpop.permute.xlu0 %258
  %vm261 = vcmask 130048
  %v263 = vsel %vm261, %v233, 0
  %v266 = vsel %vm261, %v234, 0
  %v269 = vsel %vm261, %v235, 0
  %v272 = vsel %vm261, %v236, 0
  %274 = vmatpush.msra.mxu0 0.0
  %275 = vmatpush.msra.mxu0 0.0
  %276 = vmatpush.msra.mxu0 0.0
  %277 = vmatpush.msra.mxu0 0.0
  %278 = vmatpush.msra.mxu0 0.0
  %279 = vmatpush.msra.mxu0 0.0
  %280 = vmatpush.msra.mxu0 0.0
  %281 = vmatpush.msra.mxu0 0.0
  %282 = vmatpush.msra.mxu0 0.0
  %283 = vmatpush.msra.mxu0 0.0
  %284 = vmatpush.msra.mxu0 0.0
  %285 = vmatpush.msra.mxu0 0.0
  %286 = vmatpush.msra.mxu0 0.0
  %287 = vmatpush.msra.mxu0 0.0
  %288 = vmatpush.msra.mxu0 %v232
  %289 = vmatpush.msra.mxu0 %v231
  %290 = vmatmul.f32.gmra.mxu0 %v263
  %v291 = vpop.f32.mrf.mxu0
  %v292 = vadd.f32 %v244, %v291
  %293 = vmatmul.f32.gmra.mxu0 %v266
  %v294 = vpop.f32.mrf.mxu0
  %v295 = vadd.f32 %v249, %v294
  %296 = vmatmul.f32.gmra.mxu0 %v269
  %v297 = vpop.f32.mrf.mxu0
  %v298 = vadd.f32 %v254, %v297
  %299 = vmatmul.f32.gmra.mxu0 %v272
  %v300 = vpop.f32.mrf.mxu0
  %v301 = vadd.f32 %v259, %v300
  %302 = vdwg.mxu0
  %v303 = vmul.f32 %v292, 0.01
  %v304 = vmul.f32 %v295, 0.01
  %v305 = vmul.f32 %v298, 0.01
  %v306 = vmul.f32 %v301, 0.01
  %v307 = vmax.f32 %v292, %v303
  %v308 = vmax.f32 %v295, %v304
  %v309 = vmax.f32 %v298, %v305
  %v310 = vmax.f32 %v301, %v306
  %vm311 = vcmask 15360
  %v313 = vsel %vm311, %v158, 0
  %v316 = vsel %vm311, %v161, 0
  %v319 = vsel %vm311, %v164, 0
  %v322 = vsel %vm311, %v167, 0
  %vm324 = vcmask 1041408
  %v326 = vsel %vm324, %v179, 0
  %328 = vmatpush.msra.mxu0 0.0
  %329 = vmatpush.msra.mxu0 0.0
  %330 = vmatpush.msra.mxu0 0.0
  %331 = vmatpush.msra.mxu0 0.0
  %332 = vmatpush.msra.mxu0 0.0
  %333 = vmatpush.msra.mxu0 0.0
  %334 = vmatpush.msra.mxu0 0.0
  %335 = vmatpush.msra.mxu0 0.0
  %336 = vmatpush.msra.mxu0 0.0
  %337 = vmatpush.msra.mxu0 0.0
  %338 = vmatpush.msra.mxu0 0.0
  %339 = vmatpush.msra.mxu0 0.0
  %340 = vmatpush.msra.mxu0 0.0
  %341 = vmatpush.msra.mxu0 0.0
  %342 = vmatpush.msra.mxu0 0.0
  %343 = vmatpush.msra.mxu0 %v326
  %344 = vmatmul.f32.gmra.mxu0 %v313
  %v345 = vpop.f32.mrf.mxu0
  %v346 = vadd.f32 0.0, %v345
  %347 = vmatmul.f32.gmra.mxu0 %v316
  %v348 = vpop.f32.mrf.mxu0
  %v349 = vadd.f32 0.0, %v348
  %350 = vmatmul.f32.gmra.mxu0 %v319
  %v351 = vpop.f32.mrf.mxu0
  %v352 = vadd.f32 0.0, %v351
  %353 = vmatmul.f32.gmra.mxu0 %v322
  %v354 = vpop.f32.mrf.mxu0
  %v355 = vadd.f32 0.0, %v354
  %356 = vdwg.mxu0
  %v357 = vmul.f32 %v307, %v346
  %v358 = vmul.f32 %v308, %v349
  %v359 = vmul.f32 %v309, %v352
  %v360 = vmul.f32 %v310, %v355
  %vm361 = vcmask 998400
  %362 = vst.msk [vmem:[%s3] sm:$0xff] %vm361, %v357
  %363 = vst.msk [vmem:[%s3 + $0x8] sm:$0xff] %vm361, %v358
  %364 = vst.msk [vmem:[%s3 + $0x10] sm:$0xff] %vm361, %v359
  %365 = vst.msk [vmem:[%s3 + $0x18] sm:$0xff] %vm361, %v360
  // Predicated region
  $region14: #{forward.1} parent=0 // pred_check
    _
  $region15: #{forward.1} parent=0 // pred_check_branch
    %367 = sbr.rel (0) target = $region17
  $region16: #{forward.1} parent=0 // pred_region
    _
  $region17: #{forward.1} parent=0 // pred_fallthru
    _
  // Predicated region
  $region18: #{forward.1} parent=0 // pred_check
    _
  $region19: #{forward.1} parent=0 // pred_check_branch
    %369 = sbr.rel (0) target = $region21
  $region20: #{forward.1} parent=0 // pred_region
    _
  $region21: #{forward.1} parent=0 // pred_fallthru
    _

</llo_original>
